<compile_context>
chip_gen: v5e
topology: v5e:2x2
jax: 0.10.0
libtpu: 0.0.40
codegen_flags: <defaults>
</compile_context>

<pallas_src>
import jax
import jax.numpy as jnp
from jax.experimental import pallas as pl
from jax.experimental.pallas import tpu as pltpu

HIDDEN = 128
LANE = 128
MIN_TILE = 16       # bf16 packs 2 rows per sublane -> 16-row batch granularity
MAX_TILE = 1024     # largest useful batch tile (amortizes per-grid-step overhead)


def _round_up(x, m):
    return ((x + m - 1) // m) * m


def _cdiv(a, b):
    return -(-a // b)


def _choose_tb(batch):
    """Batch-tile selection (grid-overhead vs. pad-waste vs. v7x megacore).

    * batch <= 128: a single sublane-aligned tile (splitting only adds per-step
      overhead); rounded to 16 rows for clean bf16 sublane packing.
    * larger batches: tile ~= batch / n_steps with n_steps >= 2 (so the
      "parallel" batch axis shards across both TensorCores on v7x) and tiles
      capped at MAX_TILE rows, which keeps zero-row padding waste small
      (e.g. B=300 -> TB=160 / 2 steps, B=2048 -> TB=1024 / 2 steps).
    """
    if batch <= 128:
        return _round_up(batch, MIN_TILE)
    n_steps = max(2, _cdiv(batch, MAX_TILE))
    return _round_up(_cdiv(batch, n_steps), MIN_TILE)


def dqn_mlp_kernel(x_ref, w1_ref, b1_ref, w2_ref, b2_ref, w3_ref, b3_ref, o_ref):
    """One batch tile of the fused DQN forward pass (all weights VMEM-resident)."""
    x = x_ref[...]                                                   # (TB, S) bf16
    # fc1 + ReLU (f32 accumulation on the MXU, bf16 re-cast for the next matmul)
    h1 = jnp.dot(x, w1_ref[...], preferred_element_type=jnp.float32) + b1_ref[...]
    h1 = jnp.maximum(h1, 0.0).astype(jnp.bfloat16)
    # fc2 + ReLU
    h2 = jnp.dot(h1, w2_ref[...], preferred_element_type=jnp.float32) + b2_ref[...]
    h2 = jnp.maximum(h2, 0.0).astype(jnp.bfloat16)
    # fc3 (no activation): lane-dense (TB, 128) store, bf16 halves HBM writeback
    q = jnp.dot(h2, w3_ref[...], preferred_element_type=jnp.float32) + b3_ref[...]
    o_ref[...] = q.astype(o_ref.dtype)


def prepare_params(params):
    """One-time host-side weight prep (bf16 casts + 128-column pad of fc3).

    Call once and reuse the result across forward calls — previously this was
    re-executed inside every forward.
    """
    w1, b1, w2, b2, w3, b3 = params
    state_size, hidden = w1.shape
    assert hidden == HIDDEN and w2.shape == (HIDDEN, HIDDEN)
    action_size = w3.shape[1]
    n_pad = _round_up(action_size, LANE)
    w3_p = jnp.zeros((HIDDEN, n_pad), jnp.bfloat16).at[:, :action_size].set(
        w3.astype(jnp.bfloat16))
    b3_p = jnp.zeros((1, n_pad), jnp.float32).at[:, :action_size].set(
        b3.astype(jnp.float32))
    prepared = (
        w1.astype(jnp.bfloat16), b1.astype(jnp.float32),
        w2.astype(jnp.bfloat16), b2.astype(jnp.float32),
        w3_p, b3_p,
    )
    prepared = jax.block_until_ready(prepared)   # materialize once, outside the hot loop
    return prepared, action_size


def dqn_forward(x, prepared, action_size):
    """x: [B, state_size] float32 -> Q-values [B, action_size] float32."""
    w1, b1, w2, b2, w3_p, b3_p = prepared
    B, state_size = x.shape
    assert w1.shape[0] == state_size
    n_pad = w3_p.shape[1]

    # Per-call input prep: bf16 cast + zero-pad the batch up to the tile size.
    tb = _choose_tb(B)
    b_pad = _round_up(B, tb)
    x_bf = x.astype(jnp.bfloat16)
    if b_pad != B:
        x_bf = jnp.pad(x_bf, ((0, b_pad - B), (0, 0)))
    grid = (b_pad // tb,)

    # Constant (0,0) index_map -> weight/bias blocks are DMA'd once and stay
    # VMEM-resident across the whole grid.
    resident = lambda shape: pl.BlockSpec(shape, lambda i: (0, 0))

    flops = 2 * b_pad * (state_size * HIDDEN + HIDDEN * HIDDEN + HIDDEN * n_pad)
    bytes_accessed = (x_bf.size * 2
                      + (w1.size + w2.size + w3_p.size) * 2
                      + (b1.size + b2.size + b3_p.size) * 4
                      + b_pad * n_pad * 2)          # bf16 output stream

    out_padded = pl.pallas_call(
        dqn_mlp_kernel,
        out_shape=jax.ShapeDtypeStruct((b_pad, n_pad), jnp.bfloat16),
        grid=grid,
        in_specs=[
            pl.BlockSpec((tb, state_size), lambda i: (i, 0)),   # x: tiled over batch
            resident((state_size, HIDDEN)), resident((1, HIDDEN)),
            resident((HIDDEN, HIDDEN)),     resident((1, HIDDEN)),
            resident((HIDDEN, n_pad)),      resident((1, n_pad)),
        ],
        out_specs=pl.BlockSpec((tb, n_pad), lambda i: (i, 0)),
        compiler_params=pltpu.CompilerParams(
            dimension_semantics=("parallel",),       # megacore-shard the batch on v7x
            vmem_limit_bytes=32 * 1024 * 1024,       # headroom for 1024-row tiles on v5e
        ),
        cost_estimate=pl.CostEstimate(
            flops=flops, transcendentals=0, bytes_accessed=bytes_accessed),
    )(x_bf, w1, b1, w2, b2, w3_p, b3_p)

    # Slice off batch/column padding; upcast the small real slab back to f32.
    return out_padded[:B, :action_size].astype(jnp.float32)


def init_params(key, state_size, action_size):
    """Deterministic synthetic parameters (PyTorch Linear init, stored transposed)."""
    ks = jax.random.split(key, 6)

    def uniform(k, shape, fan_in):
        bound = 1.0 / jnp.sqrt(fan_in)
        return jax.random.uniform(k, shape, jnp.float32, -bound, bound)

    w1 = uniform(ks[0], (state_size, HIDDEN), state_size)
    b1 = uniform(ks[1], (1, HIDDEN), state_size)
    w2 = uniform(ks[2], (HIDDEN, HIDDEN), HIDDEN)
    b2 = uniform(ks[3], (1, HIDDEN), HIDDEN)
    w3 = uniform(ks[4], (HIDDEN, action_size), HIDDEN)
    b3 = uniform(ks[5], (1, action_size), HIDDEN)
    return (w1, b1, w2, b2, w3, b3)


def reference_forward(x, params):
    """Pure-JAX reference with the same bf16-operand / f32-accumulate numerics
    (including the final bf16 output cast) as the kernel.
    NOTE: bf16 deviates from a pure-f32 PyTorch DQNNetwork at ~1e-2 level."""
    w1, b1, w2, b2, w3, b3 = params
    h1 = jnp.maximum(jnp.dot(x.astype(jnp.bfloat16), w1.astype(jnp.bfloat16),
                             preferred_element_type=jnp.float32) + b1, 0.0)
    h2 = jnp.maximum(jnp.dot(h1.astype(jnp.bfloat16), w2.astype(jnp.bfloat16),
                             preferred_element_type=jnp.float32) + b2, 0.0)
    q = jnp.dot(h2.astype(jnp.bfloat16), w3.astype(jnp.bfloat16),
                preferred_element_type=jnp.float32) + b3
    return q.astype(jnp.bfloat16).astype(jnp.float32)


if __name__ == "__main__":
    batch = 2
    state_size = 8
    action_size = 4

    key = jax.random.PRNGKey(0)
    kx, kp = jax.random.split(key)
    x = jax.random.normal(kx, (batch, state_size), dtype=jnp.float32)
    params = init_params(kp, state_size, action_size)

    # One-time weight prep (hoisted out of the per-call forward path).
    prepared, act_size = prepare_params(params)

    out = dqn_forward(x, prepared, act_size)
    out = jax.block_until_ready(out)

    ref = reference_forward(x, params)
    assert out.shape == (batch, action_size)
    assert jnp.allclose(out, ref, atol=1e-2, rtol=1e-2), "mismatch vs JAX reference"

    print("KERNEL_OK")
</pallas_src>

<mosaic_0001>
module attributes {stable_mosaic.version = 11 : i64} {
  func.func @dqn_mlp_kernel(%arg0: i32, %arg1: memref<16x8xbf16, #tpu.memory_space<vmem>>, %arg2: memref<8x128xbf16, #tpu.memory_space<vmem>>, %arg3: memref<1x128xf32, #tpu.memory_space<vmem>>, %arg4: memref<128x128xbf16, #tpu.memory_space<vmem>>, %arg5: memref<1x128xf32, #tpu.memory_space<vmem>>, %arg6: memref<128x128xbf16, #tpu.memory_space<vmem>>, %arg7: memref<1x128xf32, #tpu.memory_space<vmem>>, %arg8: memref<16x128xbf16, #tpu.memory_space<vmem>>) attributes {dimension_semantics = [#tpu.dimension_semantics<parallel>], iteration_bounds = array<i64: 1>, scalar_prefetch = 0 : i64, scratch_operands = 0 : i64, tpu.core_type = #tpu.core_type<tc>, window_params = [{transform_indices = @transform_0, window_bounds = array<i64: 16, 8>}, {pipeline_mode = #tpu.pipeline_mode<synchronous>, transform_indices = @transform_1, window_bounds = array<i64: 8, 128>}, {pipeline_mode = #tpu.pipeline_mode<synchronous>, transform_indices = @transform_2, window_bounds = array<i64: 1, 128>}, {pipeline_mode = #tpu.pipeline_mode<synchronous>, transform_indices = @transform_3, window_bounds = array<i64: 128, 128>}, {pipeline_mode = #tpu.pipeline_mode<synchronous>, transform_indices = @transform_4, window_bounds = array<i64: 1, 128>}, {pipeline_mode = #tpu.pipeline_mode<synchronous>, transform_indices = @transform_5, window_bounds = array<i64: 128, 128>}, {pipeline_mode = #tpu.pipeline_mode<synchronous>, transform_indices = @transform_6, window_bounds = array<i64: 1, 128>}, {transform_indices = @transform_7, window_bounds = array<i64: 16, 128>}]} {
    %c0 = arith.constant 0 : index
    %c0_0 = arith.constant 0 : index
    %0 = vector.load %arg1[%c0, %c0_0] : memref<16x8xbf16, #tpu.memory_space<vmem>>, vector<16x8xbf16>
    %c0_1 = arith.constant 0 : index
    %c0_2 = arith.constant 0 : index
    %1 = vector.load %arg2[%c0_1, %c0_2] : memref<8x128xbf16, #tpu.memory_space<vmem>>, vector<8x128xbf16>
    %cst = arith.constant dense<0.000000e+00> : vector<16x128xf32>
    %2 = tpu.matmul %0, %1, %cst {dimension_numbers = #tpu.dot_dimension_numbers<[1], [0], [0], [1], [0, 0, 1, 1], [], []>} : vector<16x8xbf16>, vector<8x128xbf16>, vector<16x128xf32> -> vector<16x128xf32>
    %c0_3 = arith.constant 0 : index
    %c0_4 = arith.constant 0 : index
    %3 = vector.load %arg3[%c0_3, %c0_4] : memref<1x128xf32, #tpu.memory_space<vmem>>, vector<1x128xf32>
    %4 = vector.broadcast %3 : vector<1x128xf32> to vector<16x128xf32>
    %5 = arith.addf %2, %4 : vector<16x128xf32>
    %cst_5 = arith.constant 0.000000e+00 : f32
    %6 = vector.broadcast %cst_5 : f32 to vector<16x128xf32>
    %7 = arith.maximumf %5, %6 : vector<16x128xf32>
    %8 = arith.truncf %7 : vector<16x128xf32> to vector<16x128xbf16>
    %c0_6 = arith.constant 0 : index
    %c0_7 = arith.constant 0 : index
    %9 = vector.load %arg4[%c0_6, %c0_7] : memref<128x128xbf16, #tpu.memory_space<vmem>>, vector<128x128xbf16>
    %cst_8 = arith.constant dense<0.000000e+00> : vector<16x128xf32>
    %10 = tpu.matmul %8, %9, %cst_8 {dimension_numbers = #tpu.dot_dimension_numbers<[1], [0], [0], [1], [0, 0, 1, 1], [], []>} : vector<16x128xbf16>, vector<128x128xbf16>, vector<16x128xf32> -> vector<16x128xf32>
    %c0_9 = arith.constant 0 : index
    %c0_10 = arith.constant 0 : index
    %11 = vector.load %arg5[%c0_9, %c0_10] : memref<1x128xf32, #tpu.memory_space<vmem>>, vector<1x128xf32>
    %12 = vector.broadcast %11 : vector<1x128xf32> to vector<16x128xf32>
    %13 = arith.addf %10, %12 : vector<16x128xf32>
    %cst_11 = arith.constant 0.000000e+00 : f32
    %14 = vector.broadcast %cst_11 : f32 to vector<16x128xf32>
    %15 = arith.maximumf %13, %14 : vector<16x128xf32>
    %16 = arith.truncf %15 : vector<16x128xf32> to vector<16x128xbf16>
    %c0_12 = arith.constant 0 : index
    %c0_13 = arith.constant 0 : index
    %17 = vector.load %arg6[%c0_12, %c0_13] : memref<128x128xbf16, #tpu.memory_space<vmem>>, vector<128x128xbf16>
    %cst_14 = arith.constant dense<0.000000e+00> : vector<16x128xf32>
    %18 = tpu.matmul %16, %17, %cst_14 {dimension_numbers = #tpu.dot_dimension_numbers<[1], [0], [0], [1], [0, 0, 1, 1], [], []>} : vector<16x128xbf16>, vector<128x128xbf16>, vector<16x128xf32> -> vector<16x128xf32>
    %c0_15 = arith.constant 0 : index
    %c0_16 = arith.constant 0 : index
    %19 = vector.load %arg7[%c0_15, %c0_16] : memref<1x128xf32, #tpu.memory_space<vmem>>, vector<1x128xf32>
    %20 = vector.broadcast %19 : vector<1x128xf32> to vector<16x128xf32>
    %21 = arith.addf %18, %20 : vector<16x128xf32>
    %22 = arith.truncf %21 : vector<16x128xf32> to vector<16x128xbf16>
    %c0_17 = arith.constant 0 : index
    %c0_18 = arith.constant 0 : index
    %23 = vector.load %arg8[%c0_17, %c0_18] : memref<16x128xbf16, #tpu.memory_space<vmem>>, vector<16x128xbf16>
    tpu.vector_store %arg8[%c0_17, %c0_18], %22 {strides = array<i32>} : memref<16x128xbf16, #tpu.memory_space<vmem>>, vector<16x128xbf16>,
    return
  }
  func.func @transform_0(%arg0: i32) -> (i32, i32) {
    %c0_i32 = arith.constant 0 : i32
    %c0_i32_0 = arith.constant 0 : i32
    return %arg0, %c0_i32 : i32, i32
  }
  func.func @transform_1(%arg0: i32) -> (i32, i32) {
    %c0_i32 = arith.constant 0 : i32
    %c0_i32_0 = arith.constant 0 : i32
    %c0_i32_1 = arith.constant 0 : i32
    return %c0_i32, %c0_i32_0 : i32, i32
  }
  func.func @transform_2(%arg0: i32) -> (i32, i32) {
    %c0_i32 = arith.constant 0 : i32
    %c0_i32_0 = arith.constant 0 : i32
    %c0_i32_1 = arith.constant 0 : i32
    return %c0_i32, %c0_i32_0 : i32, i32
  }
  func.func @transform_3(%arg0: i32) -> (i32, i32) {
    %c0_i32 = arith.constant 0 : i32
    %c0_i32_0 = arith.constant 0 : i32
    %c0_i32_1 = arith.constant 0 : i32
    return %c0_i32, %c0_i32_0 : i32, i32
  }
  func.func @transform_4(%arg0: i32) -> (i32, i32) {
    %c0_i32 = arith.constant 0 : i32
    %c0_i32_0 = arith.constant 0 : i32
    %c0_i32_1 = arith.constant 0 : i32
    return %c0_i32, %c0_i32_0 : i32, i32
  }
  func.func @transform_5(%arg0: i32) -> (i32, i32) {
    %c0_i32 = arith.constant 0 : i32
    %c0_i32_0 = arith.constant 0 : i32
    %c0_i32_1 = arith.constant 0 : i32
    return %c0_i32, %c0_i32_0 : i32, i32
  }
  func.func @transform_6(%arg0: i32) -> (i32, i32) {
    %c0_i32 = arith.constant 0 : i32
    %c0_i32_0 = arith.constant 0 : i32
    %c0_i32_1 = arith.constant 0 : i32
    return %c0_i32, %c0_i32_0 : i32, i32
  }
  func.func @transform_7(%arg0: i32) -> (i32, i32) {
    %c0_i32 = arith.constant 0 : i32
    %c0_i32_0 = arith.constant 0 : i32
    return %arg0, %c0_i32 : i32, i32
  }
}

</mosaic_0001>

<llo_original>
// kernel: tpu_custom_call.1
$region0: #{tpu_custom_call.1}
  #allocation0 [shape = 'u32[]', space=smem, size = 0x4, offset = 0x4, fixed_abs, tag = 'smem constant byte address 0x4 - core index']
  #allocation1 [shape = 'u32[72,128]{1,0:T(1,128)}', space=vmem, size = 0x9000, scoped, tag = 'internal scratch']
  %s0 = inlined_call_operand.vmem [shape: bf16[16,8], index: 0, kind: input, shape index: {}]
  %s1 = inlined_call_operand.vmem [shape: bf16[8,128], index: 1, kind: input, shape index: {}]
  %s2 = inlined_call_operand.vmem [shape: f32[1,128], index: 2, kind: input, shape index: {}]
  %s3 = inlined_call_operand.hbm [shape: bf16[128,128], index: 3, kind: input, shape index: {}]
  %s4 = inlined_call_operand.vmem [shape: f32[1,128], index: 4, kind: input, shape index: {}]
  %s5 = inlined_call_operand.hbm [shape: bf16[128,128], index: 5, kind: input, shape index: {}]
  %s6 = inlined_call_operand.vmem [shape: f32[1,128], index: 6, kind: input, shape index: {}]
  %s7 = inlined_call_operand.hbm [shape: bf16[16,128], index: 7, kind: output, shape index: {}]
  %s8 = sld [smem:[#allocation0]]
  $region46: #{tpu_custom_call.1} parent=0
    _
  %s10 = ssub.s32 1, %s8
  %s11 = scalar_select 0, %s10, %s8
  $region1: #{tpu_custom_call.1} parent=0
    #allocation2 [shape = 'u8[32768]{0}', space=vmem, size = 0x8000, scoped, tag = 'input window, operand 3, single buffered']
    #allocation3 [shape = 's32[1]{0}', space=sflag, size = 0x4, scoped, tag = 'scoped memory for tpu_custom_call.1']
    #allocation4 [shape = 's32[1]{0}', space=sflag, size = 0x4, scoped, tag = 'scoped memory for tpu_custom_call.1']
    #allocation5 [shape = 'u8[32768]{0}', space=vmem, size = 0x8000, scoped, tag = 'input window, operand 5, single buffered']
    #allocation6 [shape = 's32[1]{0}', space=sflag, size = 0x4, scoped, tag = 'scoped memory for tpu_custom_call.1']
    #allocation7 [shape = 'u8[4096]{0}', space=vmem, size = 0x1000, scoped, tag = 'output window, operand 0, single buffered']
    %12 = vsyncpa [#allocation3], 0
    %13 = vsyncpa [#allocation6], 0
    %14 = vsyncpa [#allocation4], 0
    // Predicated region
    $region2: #{tpu_custom_call.1} parent=1 // pred_check
      _
    $region3: #{tpu_custom_call.1} parent=1 // pred_check_branch
      %16 = sbr.rel (0) target = $region5
    $region4: #{tpu_custom_call.1} parent=1 // pred_region
      _
    $region5: #{tpu_custom_call.1} parent=1 // pred_fallthru
      _
    // Predicated region
    $region6: #{tpu_custom_call.1} parent=1 // pred_check
      _
    $region7: #{tpu_custom_call.1} parent=1 // pred_check_branch
      %18 = sbr.rel (0) target = $region9
    $region8: #{tpu_custom_call.1} parent=1 // pred_region
      _
    $region9: #{tpu_custom_call.1} parent=1 // pred_fallthru
      _
    // Predicated region
    $region10: #{tpu_custom_call.1} parent=1 // pred_check
      _
    $region11: #{tpu_custom_call.1} parent=1 // pred_check_branch
      %20 = sbr.rel (0) target = $region13
    $region12: #{tpu_custom_call.1} parent=1 // pred_region
      _
    $region13: #{tpu_custom_call.1} parent=1 // pred_fallthru
      _
    // Predicated region
    $region14: #{tpu_custom_call.1} parent=1 // pred_check
      _
    $region15: #{tpu_custom_call.1} parent=1 // pred_check_branch
      %22 = sbr.rel (0) target = $region17
    $region16: #{tpu_custom_call.1} parent=1 // pred_region
      %24 = vsyncadd [#allocation3], 0
      %s25 = sshll.u32 %s3, 4
      %s26 = int_to_ptr.hbm [resolvable:$true] %s25
      %s27 = sshll.u32 [#allocation2], 4
      %s28 = int_to_ptr.vmem [resolvable:$true] %s27
      %33 = dma.hbm_to_vmem [thread:$0]  %s26, 1024, %s28, [#allocation3], 64, 64, 4
    $region17: #{tpu_custom_call.1} parent=1 // pred_fallthru
      _
    // Predicated region
    $region18: #{tpu_custom_call.1} parent=1 // pred_check
      _
    $region19: #{tpu_custom_call.1} parent=1 // pred_check_branch
      %35 = sbr.rel (0) target = $region21
    $region20: #{tpu_custom_call.1} parent=1 // pred_region
      _
    $region21: #{tpu_custom_call.1} parent=1 // pred_fallthru
      _
    // Predicated region
    $region22: #{tpu_custom_call.1} parent=1 // pred_check
      _
    $region23: #{tpu_custom_call.1} parent=1 // pred_check_branch
      %37 = sbr.rel (0) target = $region25
    $region24: #{tpu_custom_call.1} parent=1 // pred_region
      %39 = vsyncadd [#allocation6], 0
      %s40 = sshll.u32 %s5, 4
      %s41 = int_to_ptr.hbm [resolvable:$true] %s40
      %s42 = sshll.u32 [#allocation5], 4
      %s43 = int_to_ptr.vmem [resolvable:$true] %s42
      %48 = dma.hbm_to_vmem [thread:$0]  %s41, 1024, %s43, [#allocation6], 64, 64, 4
    $region25: #{tpu_custom_call.1} parent=1 // pred_fallthru
      _
    // Predicated region
    $region26: #{tpu_custom_call.1} parent=1 // pred_check
      _
    $region27: #{tpu_custom_call.1} parent=1 // pred_check_branch
      %50 = sbr.rel (0) target = $region29
    $region28: #{tpu_custom_call.1} parent=1 // pred_region
      _
    $region29: #{tpu_custom_call.1} parent=1 // pred_fallthru
      _
    // Predicated region
    $region30: #{tpu_custom_call.1} parent=1 // pred_check
      _
    $region31: #{tpu_custom_call.1} parent=1 // pred_check_branch
      %52 = sbr.rel (0) target = $region33
    $region32: #{tpu_custom_call.1} parent=1 // pred_region
      %54 = dma.done [#allocation3], 1024
    $region33: #{tpu_custom_call.1} parent=1 // pred_fallthru
      _
    // Predicated region
    $region34: #{tpu_custom_call.1} parent=1 // pred_check
      _
    $region35: #{tpu_custom_call.1} parent=1 // pred_check_branch
      %56 = sbr.rel (0) target = $region37
    $region36: #{tpu_custom_call.1} parent=1 // pred_region
      %58 = dma.done [#allocation6], 1024
    $region37: #{tpu_custom_call.1} parent=1 // pred_fallthru
      _
    %v60 = vld [vmem:[%s0] sm:$0xf]
    %v61 = vld [vmem:[%s0 + $0x4] sm:$0xf]
    %v62 = vld [vmem:[%s1] sm:$0xf]
    %v63 = vld [vmem:[%s2] sm:$0x1]
    %v65 = vperm.slane %v63, 0
    %v69 = vunpack.c.l.b16 %v60
    %v70 = vunpack.c.l.b16 %v61
    %v71 = vpack.c.b16 %v70, %v69
    %vm72 = vcmask 64512
    %v74 = vsel %vm72, %v71, 0
    %vm76 = vcmask 1043456
    %v78 = vsel %vm76, %v62, 0
    %80 = vmatpush.bf16.msra.mxu0 0
    %81 = vmatpush.bf16.msra.mxu0 0
    %82 = vmatpush.bf16.msra.mxu0 0
    %83 = vmatpush.bf16.msra.mxu0 0
    %84 = vmatpush.bf16.msra.mxu0 0
    %85 = vmatpush.bf16.msra.mxu0 0
    %86 = vmatpush.bf16.msra.mxu0 0
    %87 = vmatpush.bf16.msra.mxu0 %v78
    %88 = vmatmul.bf16.gmra.mxu0 %v74
    %v89 = vpop.f32.mrf.mxu0
    %v90 = vadd.f32 %v65, %v89
    %v91 = vpop.f32.mrf.mxu0
    %v92 = vadd.f32 %v65, %v91
    %93 = vdwg.mxu0
    %v94 = vmax.f32 %v90, 0.0
    %v95 = vmax.f32 %v92, 0.0
    %v96 = vpack.c.bf16 %v95, %v94
    %v97 = vld [vmem:[#allocation2] sm:$0xf]
    %v98 = vld [vmem:[#allocation2 + $0x4] sm:$0xf]
    %v99 = vld [vmem:[#allocation2 + $0x8] sm:$0xf]
    %v100 = vld [vmem:[#allocation2 + $0xc] sm:$0xf]
    %v101 = vld [vmem:[#allocation2 + $0x10] sm:$0xf]
    %v102 = vld [vmem:[#allocation2 + $0x14] sm:$0xf]
    %v103 = vld [vmem:[#allocation2 + $0x18] sm:$0xf]
    %v104 = vld [vmem:[#allocation2 + $0x1c] sm:$0xf]
    %v105 = vld [vmem:[#allocation2 + $0x20] sm:$0xf]
    %v106 = vld [vmem:[#allocation2 + $0x24] sm:$0xf]
    %v107 = vld [vmem:[#allocation2 + $0x28] sm:$0xf]
    %v108 = vld [vmem:[#allocation2 + $0x2c] sm:$0xf]
    %v109 = vld [vmem:[#allocation2 + $0x30] sm:$0xf]
    %v110 = vld [vmem:[#allocation2 + $0x34] sm:$0xf]
    %v111 = vld [vmem:[#allocation2 + $0x38] sm:$0xf]
    %v112 = vld [vmem:[#allocation2 + $0x3c] sm:$0xf]
    %v113 = vld [vmem:[%s4] sm:$0x1]
    %v115 = vperm.slane %v113, 0
    %v133 = vunpack.c.l.b16 %v97
    %v134 = vunpack.c.l.b16 %v98
    %v135 = vunpack.c.l.b16 %v99
    %v136 = vunpack.c.l.b16 %v100
    %v137 = vunpack.c.l.b16 %v101
    %v138 = vunpack.c.l.b16 %v102
    %v139 = vunpack.c.l.b16 %v103
    %v140 = vunpack.c.l.b16 %v104
    %v141 = vunpack.c.l.b16 %v105
    %v142 = vunpack.c.l.b16 %v106
    %v143 = vunpack.c.l.b16 %v107
    %v144 = vunpack.c.l.b16 %v108
    %v145 = vunpack.c.l.b16 %v109
    %v146 = vunpack.c.l.b16 %v110
    %v147 = vunpack.c.l.b16 %v111
    %v148 = vunpack.c.l.b16 %v112
    %v149 = vpack.c.b16 %v134, %v133
    %v150 = vpack.c.b16 %v136, %v135
    %v151 = vpack.c.b16 %v138, %v137
    %v152 = vpack.c.b16 %v140, %v139
    %v153 = vpack.c.b16 %v142, %v141
    %v154 = vpack.c.b16 %v144, %v143
    %v155 = vpack.c.b16 %v146, %v145
    %v156 = vpack.c.b16 %v148, %v147
    %165 = vmatpush.bf16.msra.mxu0 %v156
    %166 = vmatpush.bf16.msra.mxu0 %v155
    %167 = vmatpush.bf16.msra.mxu0 %v154
    %168 = vmatpush.bf16.msra.mxu0 %v153
    %169 = vmatpush.bf16.msra.mxu0 %v152
    %170 = vmatpush.bf16.msra.mxu0 %v151
    %171 = vmatpush.bf16.msra.mxu0 %v150
    %172 = vmatpush.bf16.msra.mxu0 %v149
    %173 = vmatmul.bf16.gmra.mxu0 %v96
    %v174 = vpop.f32.mrf.mxu0
    %v175 = vadd.f32 %v115, %v174
    %v176 = vpop.f32.mrf.mxu0
    %v177 = vadd.f32 %v115, %v176
    %178 = vdwg.mxu0
    %v179 = vmax.f32 %v175, 0.0
    %v180 = vmax.f32 %v177, 0.0
    %v181 = vpack.c.bf16 %v180, %v179
    %v182 = vld [vmem:[#allocation5] sm:$0xf]
    %v183 = vld [vmem:[#allocation5 + $0x4] sm:$0xf]
    %v184 = vld [vmem:[#allocation5 + $0x8] sm:$0xf]
    %v185 = vld [vmem:[#allocation5 + $0xc] sm:$0xf]
    %v186 = vld [vmem:[#allocation5 + $0x10] sm:$0xf]
    %v187 = vld [vmem:[#allocation5 + $0x14] sm:$0xf]
    %v188 = vld [vmem:[#allocation5 + $0x18] sm:$0xf]
    %v189 = vld [vmem:[#allocation5 + $0x1c] sm:$0xf]
    %v190 = vld [vmem:[#allocation5 + $0x20] sm:$0xf]
    %v191 = vld [vmem:[#allocation5 + $0x24] sm:$0xf]
    %v192 = vld [vmem:[#allocation5 + $0x28] sm:$0xf]
    %v193 = vld [vmem:[#allocation5 + $0x2c] sm:$0xf]
    %v194 = vld [vmem:[#allocation5 + $0x30] sm:$0xf]
    %v195 = vld [vmem:[#allocation5 + $0x34] sm:$0xf]
    %v196 = vld [vmem:[#allocation5 + $0x38] sm:$0xf]
    %v197 = vld [vmem:[#allocation5 + $0x3c] sm:$0xf]
    %v198 = vld [vmem:[%s6] sm:$0x1]
    %v200 = vperm.slane %v198, 0
    %v218 = vunpack.c.l.b16 %v182
    %v219 = vunpack.c.l.b16 %v183
    %v220 = vunpack.c.l.b16 %v184
    %v221 = vunpack.c.l.b16 %v185
    %v222 = vunpack.c.l.b16 %v186
    %v223 = vunpack.c.l.b16 %v187
    %v224 = vunpack.c.l.b16 %v188
    %v225 = vunpack.c.l.b16 %v189
    %v226 = vunpack.c.l.b16 %v190
    %v227 = vunpack.c.l.b16 %v191
    %v228 = vunpack.c.l.b16 %v192
    %v229 = vunpack.c.l.b16 %v193
    %v230 = vunpack.c.l.b16 %v194
    %v231 = vunpack.c.l.b16 %v195
    %v232 = vunpack.c.l.b16 %v196
    %v233 = vunpack.c.l.b16 %v197
    %v234 = vpack.c.b16 %v219, %v218
    %v235 = vpack.c.b16 %v221, %v220
    %v236 = vpack.c.b16 %v223, %v222
    %v237 = vpack.c.b16 %v225, %v224
    %v238 = vpack.c.b16 %v227, %v226
    %v239 = vpack.c.b16 %v229, %v228
    %v240 = vpack.c.b16 %v231, %v230
    %v241 = vpack.c.b16 %v233, %v232
    %250 = vmatpush.bf16.msra.mxu0 %v241
    %251 = vmatpush.bf16.msra.mxu0 %v240
    %252 = vmatpush.bf16.msra.mxu0 %v239
    %253 = vmatpush.bf16.msra.mxu0 %v238
    %254 = vmatpush.bf16.msra.mxu0 %v237
    %255 = vmatpush.bf16.msra.mxu0 %v236
    %256 = vmatpush.bf16.msra.mxu0 %v235
    %257 = vmatpush.bf16.msra.mxu0 %v234
    %258 = vmatmul.bf16.gmra.mxu0 %v181
    %v259 = vpop.f32.mrf.mxu0
    %v260 = vadd.f32 %v200, %v259
    %v261 = vpop.f32.mrf.mxu0
    %v262 = vadd.f32 %v200, %v261
    %263 = vdwg.mxu0
    %v264 = vpack.c.bf16 %v260, %v260
    %v265 = vpack.c.bf16 %v262, %v262
    %266 = vst [vmem:[#allocation7] sm:$0xf] %v264
    %267 = vst [vmem:[#allocation7 + $0x4] sm:$0xf] %v265
    // Predicated region
    $region38: #{tpu_custom_call.1} parent=1 // pred_check
      _
    $region39: #{tpu_custom_call.1} parent=1 // pred_check_branch
      %269 = sbr.rel (0) target = $region41
    $region40: #{tpu_custom_call.1} parent=1 // pred_region
      %271 = vsyncadd [#allocation4], 0
      %s272 = sshll.u32 [#allocation7], 4
      %s273 = int_to_ptr.vmem [resolvable:$true] %s272
      %s274 = sshll.u32 %s7, 4
      %s275 = int_to_ptr.hbm [resolvable:$true] %s274
      %280 = dma.vmem_to_hbm [thread:$0]  %s273, 128, %s275, [#allocation4], 64, 64, 4
    $region41: #{tpu_custom_call.1} parent=1 // pred_fallthru
      _
    // Predicated region
    $region42: #{tpu_custom_call.1} parent=1 // pred_check
      _
    $region43: #{tpu_custom_call.1} parent=1 // pred_check_branch
      %282 = sbr.rel (0) target = $region45
    $region44: #{tpu_custom_call.1} parent=1 // pred_region
      %284 = dma.done [#allocation4], 128
    $region45: #{tpu_custom_call.1} parent=1 // pred_fallthru
      _
    %285 = vsyncpa [#allocation3], 1
    %286 = vsyncpa [#allocation6], 1
    %287 = vsyncpa [#allocation4], 1

</llo_original>
